<compile_context>
chip_gen: v6e
topology: v6e:2x2x1
jax: 0.10.0
libtpu: 0.0.40
codegen_flags: <defaults>
</compile_context>

<pallas_src>
import functools

import jax
import jax.numpy as jnp
from jax import lax
from jax.experimental import pallas as pl
from jax.experimental.pallas import tpu as pltpu


# ---------------------------------------------------------------------------
# Small helpers.
# ---------------------------------------------------------------------------
def _round_up(x, m):
    return ((x + m - 1) // m) * m


@functools.lru_cache(maxsize=None)
def _vmem_limit():
    """Generation-aware VMEM scoped limit (~44% of physical, leaves pipeline headroom)."""
    try:
        cap = getattr(pltpu.get_tpu_info(), "vmem_capacity_bytes", None)
        if cap:
            return int(cap * 7 // 16)
    except Exception:
        pass
    return 32 * 1024 * 1024


def _pick_time_chunk(T, B, Hp, budget_bytes=8 * 1024 * 1024):
    """Largest divisor of T whose double-buffered per-chunk activation traffic fits budget."""
    per_step = 2 * B * (4 * Hp + Hp) * 4  # 2 buffers x (gates + h_all) bytes per time step
    cap = max(1, budget_bytes // per_step)
    best = 1
    for d in range(1, T + 1):
        if T % d == 0 and d <= cap:
            best = d
    return best


def _pick_time_tile(T, cap=32):
    """Time tile for the FC kernel: == T (full) or a multiple-of-8 divisor of T."""
    if T <= cap:
        return T
    for d in range(cap - (cap % 8), 7, -8):
        if T % d == 0:
            return d
    return T


def _pad_gate_rows(w, H, Hp):
    """(4H, X) -> (4Hp, X): zero-pad each gate's H rows up to Hp (gate order i,f,g,o)."""
    X = w.shape[-1]
    return jnp.pad(w.reshape(4, H, X), ((0, 0), (0, Hp - H), (0, 0))).reshape(4 * Hp, X)


# ---------------------------------------------------------------------------
# Parallel tiled matmul + bias (input projection). M/N/K padded, K reduction axis.
# ---------------------------------------------------------------------------
def _matmul_bias_kernel(x_ref, w_ref, b_ref, o_ref, acc_ref):
    @pl.when(pl.program_id(2) == 0)
    def _():
        acc_ref[...] = jnp.zeros_like(acc_ref)

    acc_ref[...] += jnp.dot(x_ref[...], w_ref[...],
                            preferred_element_type=jnp.float32)

    @pl.when(pl.program_id(2) == pl.num_programs(2) - 1)
    def _():
        o_ref[...] = (acc_ref[...] + b_ref[...]).astype(o_ref.dtype)


def matmul_bias_pallas(x, w, b, *, tm=256, tn=512, tk=512, operand_dtype=jnp.float32):
    """x (M,K) @ w (K,N) + b (1,N) -> (M,N) f32, lane-dense tiles, padded dims."""
    M, K = x.shape
    K2, N = w.shape
    assert K == K2 and b.shape == (1, N)

    tm = min(tm, _round_up(M, 8))
    tn = min(tn, _round_up(N, 128))
    tk = min(tk, _round_up(K, 128))
    Mp, Np, Kp = _round_up(M, tm), _round_up(N, tn), _round_up(K, tk)

    xp = jnp.pad(x, ((0, Mp - M), (0, Kp - K))) if (Mp != M or Kp != K) else x
    wp = jnp.pad(w, ((0, Kp - K), (0, Np - N))) if (Kp != K or Np != N) else w
    bp = jnp.pad(b, ((0, 0), (0, Np - N))) if Np != N else b
    xp = xp.astype(operand_dtype)   # optionally bf16 on v6e/v7x (acc stays f32)
    wp = wp.astype(operand_dtype)

    grid_spec = pltpu.PrefetchScalarGridSpec(
        num_scalar_prefetch=0,
        grid=(Mp // tm, Np // tn, Kp // tk),
        in_specs=[
            pl.BlockSpec((tm, tk), lambda i, j, k: (i, k)),
            pl.BlockSpec((tk, tn), lambda i, j, k: (k, j)),
            pl.BlockSpec((1, tn), lambda i, j, k: (0, j)),
        ],
        out_specs=pl.BlockSpec((tm, tn), lambda i, j, k: (i, j)),
        scratch_shapes=[pltpu.VMEM((tm, tn), jnp.float32)],
    )
    out = pl.pallas_call(
        _matmul_bias_kernel,
        out_shape=jax.ShapeDtypeStruct((Mp, Np), jnp.float32),
        grid_spec=grid_spec,
        compiler_params=pltpu.CompilerParams(
            dimension_semantics=("parallel", "parallel", "arbitrary"),
            vmem_limit_bytes=_vmem_limit(),
        ),
    )(xp, wp, bp)
    if Mp != M or Np != N:
        out = out[:M, :N]
    return out


# ---------------------------------------------------------------------------
# LSTM recurrence: chunked-time streamed grid, h/c carried in VMEM scratch.
# Only h_prev @ W_hh^T + elementwise gate math stays on the serial path.
# ---------------------------------------------------------------------------
def _lstm_recurrence_kernel(gates_ref, whh_ref, h0_ref, c0_ref,
                            h_all_ref, hT_ref, cT_ref,
                            h_carry, c_carry,
                            *, chunk_len, hidden_pad, unroll):
    Hp = hidden_pad
    t_chunk = pl.program_id(1)

    @pl.when(t_chunk == 0)
    def _():
        h_carry[...] = h0_ref[...]
        c_carry[...] = c0_ref[...]

    # W_hh^T resident in VMEM for the whole chunk (constant block index -> no re-DMA).
    # TODO(synk): pltpu.matmul_push_rhs weight staging to skip per-step VMEM weight reads.
    whh = whh_ref[...]

    def _sig(v):  # sigmoid via tanh identity: 1 EUP tanh + cheap VPU scale/add
        return 0.5 * jnp.tanh(0.5 * v) + 0.5

    def step(t, carry):
        h_prev, c_prev = carry
        gates = gates_ref[t] + jnp.dot(h_prev, whh,
                                       preferred_element_type=jnp.float32)
        # Hp is a multiple of 128 -> every gate slice starts on a lane boundary.
        i_g = _sig(gates[:, 0 * Hp:1 * Hp])
        f_g = _sig(gates[:, 1 * Hp:2 * Hp])
        g_g = jnp.tanh(gates[:, 2 * Hp:3 * Hp])
        o_g = _sig(gates[:, 3 * Hp:4 * Hp])
        c_new = f_g * c_prev + i_g * g_g
        h_new = o_g * jnp.tanh(c_new)
        h_all_ref[t] = h_new
        return h_new, c_new

    h, c = lax.fori_loop(0, chunk_len, step, (h_carry[...], c_carry[...]),
                         unroll=unroll)
    h_carry[...] = h
    c_carry[...] = c

    @pl.when(t_chunk == pl.num_programs(1) - 1)
    def _():
        hT_ref[...] = h
        cT_ref[...] = c


def lstm_recurrence_pallas(gates_in, w_hh_t, h0, c0):
    """gates_in: (T, B, 4Hp) f32.  Returns (h_all (T,B,Hp), hT (B,Hp), cT (B,Hp))."""
    T, B, Gp = gates_in.shape
    Hp = h0.shape[-1]
    assert Gp == 4 * Hp

    # Optional batch-parallel megacore split (helps v7x only; needs 8-row batch blocks).
    nb = 2 if (B % 2 == 0 and (B // 2) % 8 == 0) else 1
    Bb = B // nb
    Tc = _pick_time_chunk(T, Bb, Hp)
    n_chunks = T // Tc
    unroll = Tc if Tc <= 8 else 8

    kernel = functools.partial(_lstm_recurrence_kernel, chunk_len=Tc,
                               hidden_pad=Hp, unroll=unroll)

    grid_spec = pltpu.PrefetchScalarGridSpec(
        num_scalar_prefetch=0,
        grid=(nb, n_chunks),
        in_specs=[
            pl.BlockSpec((Tc, Bb, Gp), lambda b, t: (t, b, 0)),   # streamed gate chunks
            pl.BlockSpec((Hp, Gp), lambda b, t: (0, 0)),          # W_hh^T (resident)
            pl.BlockSpec((Bb, Hp), lambda b, t: (b, 0)),          # h0
            pl.BlockSpec((Bb, Hp), lambda b, t: (b, 0)),          # c0
        ],
        out_specs=[
            pl.BlockSpec((Tc, Bb, Hp), lambda b, t: (t, b, 0)),   # streamed hidden chunks
            pl.BlockSpec((Bb, Hp), lambda b, t: (b, 0)),          # final h
            pl.BlockSpec((Bb, Hp), lambda b, t: (b, 0)),          # final c
        ],
        scratch_shapes=[pltpu.VMEM((Bb, Hp), jnp.float32),        # h carry
                        pltpu.VMEM((Bb, Hp), jnp.float32)],       # c carry
    )
    out_shapes = (
        jax.ShapeDtypeStruct((T, B, Hp), jnp.float32),
        jax.ShapeDtypeStruct((B, Hp), jnp.float32),
        jax.ShapeDtypeStruct((B, Hp), jnp.float32),
    )
    return pl.pallas_call(
        kernel,
        out_shape=out_shapes,
        grid_spec=grid_spec,
        compiler_params=pltpu.CompilerParams(
            dimension_semantics=("parallel", "arbitrary"),
            vmem_limit_bytes=_vmem_limit(),
        ),
    )(gates_in, w_hh_t, h0, c0)


# ---------------------------------------------------------------------------
# FC over vocab: consumes time-major h_all, writes batch-first (B, T, V) directly
# (no HBM transpose round trip; reorder happens on-chip with static row stores).
# ---------------------------------------------------------------------------
def _fc_batch_first_kernel(h_ref, w_ref, b_ref, o_ref, *, time_tile, batch):
    Tt, B = time_tile, batch
    Hp = h_ref.shape[-1]
    x = h_ref[...].reshape(Tt * B, Hp)                 # time-major rows
    y = jnp.dot(x, w_ref[...], preferred_element_type=jnp.float32) + b_ref[...]
    for t in range(Tt):                                # static unrolled: -> batch-first
        o_ref[:, t, :] = y[t * B:(t + 1) * B, :].astype(o_ref.dtype)


def fc_batch_first_pallas(h_all, w, b, *, tn=512, operand_dtype=jnp.float32):
    """h_all (T,B,Hp) @ w (Hp,N) + b -> logits (B,T,N) f32 (batch-first)."""
    T, B, Hp = h_all.shape
    H2, N = w.shape
    assert H2 == Hp and b.shape == (1, N)

    tn = min(tn, _round_up(N, 128))
    Np = _round_up(N, tn)
    wp = (jnp.pad(w, ((0, 0), (0, Np - N))) if Np != N else w).astype(operand_dtype)
    bp = jnp.pad(b, ((0, 0), (0, Np - N))) if Np != N else b
    hp = h_all.astype(operand_dtype)

    Tt = _pick_time_tile(T)
    kernel = functools.partial(_fc_batch_first_kernel, time_tile=Tt, batch=B)

    grid_spec = pltpu.PrefetchScalarGridSpec(
        num_scalar_prefetch=0,
        grid=(T // Tt, Np // tn),
        in_specs=[
            pl.BlockSpec((Tt, B, Hp), lambda i, j: (i, 0, 0)),
            pl.BlockSpec((Hp, tn), lambda i, j: (0, j)),
            pl.BlockSpec((1, tn), lambda i, j: (0, j)),
        ],
        out_specs=pl.BlockSpec((B, Tt, tn), lambda i, j: (0, i, j)),
    )
    out = pl.pallas_call(
        kernel,
        out_shape=jax.ShapeDtypeStruct((B, T, Np), jnp.float32),
        grid_spec=grid_spec,
        compiler_params=pltpu.CompilerParams(
            dimension_semantics=("parallel", "parallel"),
            vmem_limit_bytes=_vmem_limit(),
        ),
    )(hp, wp, bp)
    return out[:, :, :N] if Np != N else out


# ---------------------------------------------------------------------------
# Module wrapper (matches PyTorch TextRNN forward semantics, eval mode).
# ---------------------------------------------------------------------------
class TextRNNPallas:
    """JAX/Pallas port of the PyTorch TextRNN module (n_layers=1, eval mode)."""

    def __init__(self, input_size, hidden_size, embedding_size, key,
                 use_bf16_matmul=False):
        self.input_size = input_size
        self.hidden_size = hidden_size
        self.embedding_size = embedding_size
        self.n_layers = 1
        # bf16 operands for the two parallel matmuls (v6e/v7x MXU); f32 keeps exact semantics.
        self.matmul_dtype = jnp.bfloat16 if use_bf16_matmul else jnp.float32

        ks = jax.random.split(key, 7)
        H, E, V = hidden_size, embedding_size, input_size
        Hp = _round_up(H, 128)            # internal lane-aligned hidden width
        self.hidden_pad = Hp
        k_lstm = 1.0 / jnp.sqrt(H)
        k_fc = 1.0 / jnp.sqrt(H)

        # nn.Embedding: N(0, 1)
        self.embedding = jax.random.normal(ks[0], (V, E), jnp.float32)
        # nn.LSTM params, uniform(-1/sqrt(H), 1/sqrt(H)), gate order (i, f, g, o)
        w_ih = jax.random.uniform(ks[1], (4 * H, E), jnp.float32, -k_lstm, k_lstm)
        w_hh = jax.random.uniform(ks[2], (4 * H, H), jnp.float32, -k_lstm, k_lstm)
        b_ih = jax.random.uniform(ks[3], (4 * H,), jnp.float32, -k_lstm, k_lstm)
        b_hh = jax.random.uniform(ks[4], (4 * H,), jnp.float32, -k_lstm, k_lstm)
        # nn.Linear(H, V): uniform(-1/sqrt(H), 1/sqrt(H))
        w_fc = jax.random.uniform(ks[5], (V, H), jnp.float32, -k_fc, k_fc)
        b_fc = jax.random.uniform(ks[6], (V,), jnp.float32, -k_fc, k_fc)

        # Zero-pad hidden dim per gate to Hp (padded lanes stay exactly 0 through the
        # recurrence, so results are bit-identical to the unpadded computation).
        self.w_ih_t = jnp.transpose(_pad_gate_rows(w_ih, H, Hp))          # (E, 4Hp)
        w_hh_p = jnp.pad(_pad_gate_rows(w_hh, H, Hp), ((0, 0), (0, Hp - H)))
        self.w_hh_t = jnp.transpose(w_hh_p)                               # (Hp, 4Hp)
        b_pad = jnp.pad((b_ih + b_hh).reshape(4, H), ((0, 0), (0, Hp - H)))
        self.b = b_pad.reshape(1, 4 * Hp)                                 # (1, 4Hp)
        self.w_fc_t = jnp.pad(jnp.transpose(w_fc), ((0, Hp - H), (0, 0))) # (Hp, V)
        self.b_fc = b_fc.reshape(1, V)                                    # (1, V)

    def init_hidden(self, batch_size):
        z = jnp.zeros((self.n_layers, batch_size, self.hidden_size), jnp.float32)
        return (z, z)

    def forward(self, x, hidden):
        """x: (B, T) int32 token ids; hidden: ((1,B,H), (1,B,H)).
        Returns (out (B,T,V), (ht1 (1,B,H), ct1 (1,B,H)))."""
        h0, c0 = hidden
        B, T = x.shape
        H, E, V = self.hidden_size, self.embedding_size, self.input_size
        Hp = self.hidden_pad

        # Embedding gather directly in time-major order.
        # TODO(synk): fuse gather into the projection kernel (scalar-prefetch row gather).
        x_emb_tbe = jnp.take(self.embedding, jnp.transpose(x), axis=0)    # (T, B, E)

        # (1) Non-recurrent input projection for all time steps (parallel MXU matmul).
        gates_in = matmul_bias_pallas(x_emb_tbe.reshape(T * B, E), self.w_ih_t,
                                      self.b, operand_dtype=self.matmul_dtype)
        gates_in = gates_in.reshape(T, B, 4 * Hp)

        # (2) Serial recurrence (chunked-time streamed grid, h/c in f32 VMEM scratch).
        h0p = jnp.pad(h0[0], ((0, 0), (0, Hp - H))) if Hp != H else h0[0]
        c0p = jnp.pad(c0[0], ((0, 0), (0, Hp - H))) if Hp != H else c0[0]
        h_all, hT, cT = lstm_recurrence_pallas(gates_in, self.w_hh_t, h0p, c0p)

        # Dropout(p=0.2) is identity in eval mode.
        # TODO(synk): training-mode dropout mask (RNG) not implemented.

        # (3) FC over the vocab: writes batch-first logits directly (no HBM transpose).
        out = fc_batch_first_pallas(h_all, self.w_fc_t, self.b_fc,
                                    operand_dtype=self.matmul_dtype)      # (B, T, V)

        return out, (hT[:, :H][None, ...], cT[:, :H][None, ...])


if __name__ == "__main__":
    key = jax.random.PRNGKey(0)
    k_model, k_data = jax.random.split(key)

    input_size = 16      # vocab size
    hidden_size = 32
    embedding_size = 32
    batch = 2
    seq = 8

    model = TextRNNPallas(input_size, hidden_size, embedding_size, k_model)

    x = jax.random.randint(k_data, (batch, seq), 0, input_size, dtype=jnp.int32)
    hidden = model.init_hidden(batch)

    out, (ht1, ct1) = model.forward(x, hidden)
    jax.block_until_ready((out, ht1, ct1))

    assert out.shape == (batch, seq, input_size)
    assert ht1.shape == (1, batch, hidden_size)
    assert ct1.shape == (1, batch, hidden_size)
    print("KERNEL_OK")
</pallas_src>

<mosaic_0001>
module attributes {stable_mosaic.version = 11 : i64} {
  func.func @_matmul_bias_kernel(%arg0: i32, %arg1: i32, %arg2: i32, %arg3: memref<16x128xf32, #tpu.memory_space<vmem>>, %arg4: memref<128x512xf32, #tpu.memory_space<vmem>>, %arg5: memref<1x512xf32, #tpu.memory_space<vmem>>, %arg6: memref<16x512xf32, #tpu.memory_space<vmem>>, %arg7: memref<16x512xf32, #tpu.memory_space<vmem>>) attributes {dimension_semantics = [#tpu.dimension_semantics<parallel>, #tpu.dimension_semantics<parallel>, #tpu.dimension_semantics<arbitrary>], iteration_bounds = array<i64: 1, 1, 1>, scalar_prefetch = 0 : i64, scratch_operands = 1 : i64, tpu.core_type = #tpu.core_type<tc>, window_params = [{transform_indices = @transform_0, window_bounds = array<i64: 16, 128>}, {transform_indices = @transform_1, window_bounds = array<i64: 128, 512>}, {transform_indices = @transform_2, window_bounds = array<i64: 1, 512>}, {transform_indices = @transform_3, window_bounds = array<i64: 16, 512>}]} {
    %c0_i32 = arith.constant 0 : i32
    %0 = arith.cmpi eq, %arg2, %c0_i32 : i32
    %1 = arith.extui %0 : i1 to i32
    %c0_i32_0 = arith.constant 0 : i32
    %2 = arith.cmpi ne, %1, %c0_i32_0 : i32
    scf.if %2 {
      %cst_10 = arith.constant 0.000000e+00 : f32
      %12 = vector.broadcast %cst_10 : f32 to vector<16x512xf32>
      %c0_11 = arith.constant 0 : index
      %c0_12 = arith.constant 0 : index
      %13 = vector.load %arg7[%c0_11, %c0_12] : memref<16x512xf32, #tpu.memory_space<vmem>>, vector<16x512xf32>
      tpu.vector_store %arg7[%c0_11, %c0_12], %12 {strides = array<i32>} : memref<16x512xf32, #tpu.memory_space<vmem>>, vector<16x512xf32>,
    } else {
    }
    %c0 = arith.constant 0 : index
    %c0_1 = arith.constant 0 : index
    %3 = vector.load %arg7[%c0, %c0_1] : memref<16x512xf32, #tpu.memory_space<vmem>>, vector<16x512xf32>
    %c0_2 = arith.constant 0 : index
    %c0_3 = arith.constant 0 : index
    %4 = vector.load %arg3[%c0_2, %c0_3] : memref<16x128xf32, #tpu.memory_space<vmem>>, vector<16x128xf32>
    %c0_4 = arith.constant 0 : index
    %c0_5 = arith.constant 0 : index
    %5 = vector.load %arg4[%c0_4, %c0_5] : memref<128x512xf32, #tpu.memory_space<vmem>>, vector<128x512xf32>
    %cst = arith.constant dense<0.000000e+00> : vector<16x512xf32>
    %6 = tpu.matmul %4, %5, %cst {dimension_numbers = #tpu.dot_dimension_numbers<[1], [0], [0], [1], [0, 0, 1, 1], [], []>} : vector<16x128xf32>, vector<128x512xf32>, vector<16x512xf32> -> vector<16x512xf32>
    %7 = arith.addf %3, %6 : vector<16x512xf32>
    %c0_6 = arith.constant 0 : index
    %c0_7 = arith.constant 0 : index
    %8 = vector.load %arg7[%c0_6, %c0_7] : memref<16x512xf32, #tpu.memory_space<vmem>>, vector<16x512xf32>
    tpu.vector_store %arg7[%c0_6, %c0_7], %7 {strides = array<i32>} : memref<16x512xf32, #tpu.memory_space<vmem>>, vector<16x512xf32>,
    %c0_i32_8 = arith.constant 0 : i32
    %9 = arith.cmpi eq, %arg2, %c0_i32_8 : i32
    %10 = arith.extui %9 : i1 to i32
    %c0_i32_9 = arith.constant 0 : i32
    %11 = arith.cmpi ne, %10, %c0_i32_9 : i32
    scf.if %11 {
      %c0_10 = arith.constant 0 : index
      %c0_11 = arith.constant 0 : index
      %12 = vector.load %arg7[%c0_10, %c0_11] : memref<16x512xf32, #tpu.memory_space<vmem>>, vector<16x512xf32>
      %c0_12 = arith.constant 0 : index
      %c0_13 = arith.constant 0 : index
      %13 = vector.load %arg5[%c0_12, %c0_13] : memref<1x512xf32, #tpu.memory_space<vmem>>, vector<1x512xf32>
      %14 = vector.broadcast %13 : vector<1x512xf32> to vector<16x512xf32>
      %15 = arith.addf %12, %14 : vector<16x512xf32>
      %c0_14 = arith.constant 0 : index
      %c0_15 = arith.constant 0 : index
      %16 = vector.load %arg6[%c0_14, %c0_15] : memref<16x512xf32, #tpu.memory_space<vmem>>, vector<16x512xf32>
      tpu.vector_store %arg6[%c0_14, %c0_15], %15 {strides = array<i32>} : memref<16x512xf32, #tpu.memory_space<vmem>>, vector<16x512xf32>,
    } else {
    }
    return
  }
  func.func @transform_0(%arg0: i32, %arg1: i32, %arg2: i32) -> (i32, i32) {
    %c0_i32 = arith.constant 0 : i32
    return %arg0, %arg2 : i32, i32
  }
  func.func @transform_1(%arg0: i32, %arg1: i32, %arg2: i32) -> (i32, i32) {
    %c0_i32 = arith.constant 0 : i32
    return %arg2, %arg1 : i32, i32
  }
  func.func @transform_2(%arg0: i32, %arg1: i32, %arg2: i32) -> (i32, i32) {
    %c0_i32 = arith.constant 0 : i32
    %c0_i32_0 = arith.constant 0 : i32
    return %c0_i32, %arg1 : i32, i32
  }
  func.func @transform_3(%arg0: i32, %arg1: i32, %arg2: i32) -> (i32, i32) {
    %c0_i32 = arith.constant 0 : i32
    return %arg0, %arg1 : i32, i32
  }
}

</mosaic_0001>

<llo_original>
// kernel: tpu_custom_call.1
$region0: #{tpu_custom_call.1}
  #allocation0 [shape = 'u32[]', space=smem, size = 0x4, offset = 0x4, fixed_abs, tag = 'smem constant byte address 0x4 - core index']
  #allocation1 [shape = 'u32[144,128]{1,0:T(1,128)}', space=vmem, size = 0x12000, scoped, tag = 'internal scratch']
  #allocation2 [shape = 'f32[16,512]{1,0:T(8,128)}', space=vmem, size = 0x8000, scoped, tag = 'scratch operand']
  %s0 = inlined_call_operand.hbm [shape: f32[16,128], index: 0, kind: input, shape index: {}]
  %s1 = inlined_call_operand.hbm [shape: f32[128,512], index: 1, kind: input, shape index: {}]
  %s2 = inlined_call_operand.hbm [shape: f32[1,512], index: 2, kind: input, shape index: {}]
  %s3 = inlined_call_operand.hbm [shape: f32[16,512], index: 3, kind: output, shape index: {}]
  %s4 = sld [smem:[#allocation0]]
  $region42: #{tpu_custom_call.1} parent=0
    _
  %s6 = ssub.s32 1, %s4
  %s7 = scalar_select 0, %s6, %s4
  $region1: #{tpu_custom_call.1} parent=0
    #allocation3 [shape = 'u8[8192]{0}', space=vmem, size = 0x2000, scoped, tag = 'input window, operand 0, single buffered']
    #allocation4 [shape = 's32[1]{0}', space=sflag, size = 0x4, scoped, tag = 'scoped memory for tpu_custom_call.1']
    #allocation5 [shape = 's32[1]{0}', space=sflag, size = 0x4, scoped, tag = 'scoped memory for tpu_custom_call.1']
    #allocation6 [shape = 'u8[262144]{0}', space=vmem, size = 0x40000, scoped, tag = 'input window, operand 1, single buffered']
    #allocation7 [shape = 's32[1]{0}', space=sflag, size = 0x4, scoped, tag = 'scoped memory for tpu_custom_call.1']
    #allocation8 [shape = 'u8[2048]{0}', space=vmem, size = 0x800, scoped, tag = 'input window, operand 2, single buffered']
    #allocation9 [shape = 'u8[32768]{0}', space=vmem, size = 0x8000, scoped, tag = 'output window, operand 0, single buffered']
    %8 = vsyncpa [#allocation4], 0
    %9 = vsyncpa [#allocation7], 0
    %10 = vsyncpa [#allocation5], 0
    // Predicated region
    $region2: #{tpu_custom_call.1} parent=1 // pred_check
      _
    $region3: #{tpu_custom_call.1} parent=1 // pred_check_branch
      %12 = sbr.rel (0) target = $region5
    $region4: #{tpu_custom_call.1} parent=1 // pred_region
      %s14 = ssub.s32 256, 256
      %15 = vsyncadd [#allocation4], %s14
      %s16 = sshll.u32 [#allocation3], 4
      %s17 = int_to_ptr.vmem [resolvable:$true] %s16
      %22 = dma.hbm_to_vmem [thread:$0]  %s0, 256, %s17, [#allocation4], 128, 128, 8
    $region5: #{tpu_custom_call.1} parent=1 // pred_fallthru
      _
    // Predicated region
    $region6: #{tpu_custom_call.1} parent=1 // pred_check
      _
    $region7: #{tpu_custom_call.1} parent=1 // pred_check_branch
      %24 = sbr.rel (0) target = $region9
    $region8: #{tpu_custom_call.1} parent=1 // pred_region
      %s26 = ssub.s32 8192, 8192
      %27 = vsyncadd [#allocation7], %s26
      %s28 = sshll.u32 [#allocation6], 4
      %s29 = int_to_ptr.vmem [resolvable:$true] %s28
      %34 = dma.hbm_to_vmem [thread:$0]  %s1, 8192, %s29, [#allocation7], 512, 512, 32
    $region9: #{tpu_custom_call.1} parent=1 // pred_fallthru
      _
    // Predicated region
    $region10: #{tpu_custom_call.1} parent=1 // pred_check
      _
    $region11: #{tpu_custom_call.1} parent=1 // pred_check_branch
      %36 = sbr.rel (0) target = $region13
    $region12: #{tpu_custom_call.1} parent=1 // pred_region
      %s38 = ssub.s32 64, 64
      %39 = vsyncadd [#allocation7], %s38
      %s41 = sshll.u32 [#allocation8], 4
      %s42 = int_to_ptr.vmem [resolvable:$true] %s41
      %44 = dma.hbm_to_vmem [thread:$0]  %s2, 64, %s42, [#allocation7]
    $region13: #{tpu_custom_call.1} parent=1 // pred_fallthru
      _
    // Predicated region
    $region14: #{tpu_custom_call.1} parent=1 // pred_check
      _
    $region15: #{tpu_custom_call.1} parent=1 // pred_check_branch
      %46 = sbr.rel (0) target = $region17
    $region16: #{tpu_custom_call.1} parent=1 // pred_region
      %47 = dma.done [#allocation4], 256
    $region17: #{tpu_custom_call.1} parent=1 // pred_fallthru
      _
    // Predicated region
    $region18: #{tpu_custom_call.1} parent=1 // pred_check
      _
    $region19: #{tpu_custom_call.1} parent=1 // pred_check_branch
      %49 = sbr.rel (0) target = $region21
    $region20: #{tpu_custom_call.1} parent=1 // pred_region
      %50 = dma.done [#allocation7], 8192
    $region21: #{tpu_custom_call.1} parent=1 // pred_fallthru
      _
    // Predicated region
    $region22: #{tpu_custom_call.1} parent=1 // pred_check
      _
    $region23: #{tpu_custom_call.1} parent=1 // pred_check_branch
      %52 = sbr.rel (0) target = $region25
    $region24: #{tpu_custom_call.1} parent=1 // pred_region
      %53 = dma.done [#allocation7], 64
    $region25: #{tpu_custom_call.1} parent=1 // pred_fallthru
      _
    %p54 = scmp.eq.s32.totalorder 0, 0
    // Predicated region
    $region26: #{tpu_custom_call.1} parent=1 // pred_check
      %p55 = pneg %p54
    $region27: #{tpu_custom_call.1} parent=1 // pred_check_branch
      %57 = sbr.rel (%p55) target = $region29
    $region28: #{tpu_custom_call.1} parent=1 // pred_region
      %58 = vst [vmem:[#allocation2] sm:$0xff] 0.0
      %59 = vst [vmem:[#allocation2 + $0x8] sm:$0xff] 0.0
      %60 = vst [vmem:[#allocation2 + $0x10] sm:$0xff] 0.0
      %61 = vst [vmem:[#allocation2 + $0x18] sm:$0xff] 0.0
      %62 = vst [vmem:[#allocation2 + $0x20] sm:$0xff] 0.0
      %63 = vst [vmem:[#allocation2 + $0x28] sm:$0xff] 0.0
      %64 = vst [vmem:[#allocation2 + $0x30] sm:$0xff] 0.0
      %65 = vst [vmem:[#allocation2 + $0x38] sm:$0xff] 0.0
    $region29: #{tpu_custom_call.1} parent=1 // pred_fallthru
      _
    %v66 = vld [vmem:[#allocation2] sm:$0xff]
    %v67 = vld [vmem:[#allocation2 + $0x8] sm:$0xff]
    %v68 = vld [vmem:[#allocation2 + $0x10] sm:$0xff]
    %v69 = vld [vmem:[#allocation2 + $0x18] sm:$0xff]
    %v70 = vld [vmem:[#allocation2 + $0x20] sm:$0xff]
    %v71 = vld [vmem:[#allocation2 + $0x28] sm:$0xff]
    %v72 = vld [vmem:[#allocation2 + $0x30] sm:$0xff]
    %v73 = vld [vmem:[#allocation2 + $0x38] sm:$0xff]
    %v74 = vld [vmem:[#allocation3] sm:$0xff]
    %v75 = vld [vmem:[#allocation3 + $0x8] sm:$0xff]
    %v76 = vld [vmem:[#allocation6] sm:$0xff]
    %v77 = vld [vmem:[#allocation6 + $0x8] sm:$0xff]
    %v78 = vld [vmem:[#allocation6 + $0x10] sm:$0xff]
    %v79 = vld [vmem:[#allocation6 + $0x18] sm:$0xff]
    %v80 = vld [vmem:[#allocation6 + $0x20] sm:$0xff]
    %v81 = vld [vmem:[#allocation6 + $0x28] sm:$0xff]
    %v82 = vld [vmem:[#allocation6 + $0x30] sm:$0xff]
    %v83 = vld [vmem:[#allocation6 + $0x38] sm:$0xff]
    %v84 = vld [vmem:[#allocation6 + $0x40] sm:$0xff]
    %v85 = vld [vmem:[#allocation6 + $0x48] sm:$0xff]
    %v86 = vld [vmem:[#allocation6 + $0x50] sm:$0xff]
    %v87 = vld [vmem:[#allocation6 + $0x58] sm:$0xff]
    %v88 = vld [vmem:[#allocation6 + $0x60] sm:$0xff]
    %v89 = vld [vmem:[#allocation6 + $0x68] sm:$0xff]
    %v90 = vld [vmem:[#allocation6 + $0x70] sm:$0xff]
    %v91 = vld [vmem:[#allocation6 + $0x78] sm:$0xff]
    %v92 = vld [vmem:[#allocation6 + $0x80] sm:$0xff]
    %v93 = vld [vmem:[#allocation6 + $0x88] sm:$0xff]
    %v94 = vld [vmem:[#allocation6 + $0x90] sm:$0xff]
    %v95 = vld [vmem:[#allocation6 + $0x98] sm:$0xff]
    %v96 = vld [vmem:[#allocation6 + $0xa0] sm:$0xff]
    %v97 = vld [vmem:[#allocation6 + $0xa8] sm:$0xff]
    %v98 = vld [vmem:[#allocation6 + $0xb0] sm:$0xff]
    %v99 = vld [vmem:[#allocation6 + $0xb8] sm:$0xff]
    %v100 = vld [vmem:[#allocation6 + $0xc0] sm:$0xff]
    %v101 = vld [vmem:[#allocation6 + $0xc8] sm:$0xff]
    %v102 = vld [vmem:[#allocation6 + $0xd0] sm:$0xff]
    %v103 = vld [vmem:[#allocation6 + $0xd8] sm:$0xff]
    %v104 = vld [vmem:[#allocation6 + $0xe0] sm:$0xff]
    %v105 = vld [vmem:[#allocation6 + $0xe8] sm:$0xff]
    %v106 = vld [vmem:[#allocation6 + $0xf0] sm:$0xff]
    %v107 = vld [vmem:[#allocation6 + $0xf8] sm:$0xff]
    %v108 = vld [vmem:[#allocation6 + $0x100] sm:$0xff]
    %v109 = vld [vmem:[#allocation6 + $0x108] sm:$0xff]
    %v110 = vld [vmem:[#allocation6 + $0x110] sm:$0xff]
    %v111 = vld [vmem:[#allocation6 + $0x118] sm:$0xff]
    %v112 = vld [vmem:[#allocation6 + $0x120] sm:$0xff]
    %v113 = vld [vmem:[#allocation6 + $0x128] sm:$0xff]
    %v114 = vld [vmem:[#allocation6 + $0x130] sm:$0xff]
    %v115 = vld [vmem:[#allocation6 + $0x138] sm:$0xff]
    %v116 = vld [vmem:[#allocation6 + $0x140] sm:$0xff]
    %v117 = vld [vmem:[#allocation6 + $0x148] sm:$0xff]
    %v118 = vld [vmem:[#allocation6 + $0x150] sm:$0xff]
    %v119 = vld [vmem:[#allocation6 + $0x158] sm:$0xff]
    %v120 = vld [vmem:[#allocation6 + $0x160] sm:$0xff]
    %v121 = vld [vmem:[#allocation6 + $0x168] sm:$0xff]
    %v122 = vld [vmem:[#allocation6 + $0x170] sm:$0xff]
    %v123 = vld [vmem:[#allocation6 + $0x178] sm:$0xff]
    %v124 = vld [vmem:[#allocation6 + $0x180] sm:$0xff]
    %v125 = vld [vmem:[#allocation6 + $0x188] sm:$0xff]
    %v126 = vld [vmem:[#allocation6 + $0x190] sm:$0xff]
    %v127 = vld [vmem:[#allocation6 + $0x198] sm:$0xff]
    %v128 = vld [vmem:[#allocation6 + $0x1a0] sm:$0xff]
    %v129 = vld [vmem:[#allocation6 + $0x1a8] sm:$0xff]
    %v130 = vld [vmem:[#allocation6 + $0x1b0] sm:$0xff]
    %v131 = vld [vmem:[#allocation6 + $0x1b8] sm:$0xff]
    %v132 = vld [vmem:[#allocation6 + $0x1c0] sm:$0xff]
    %v133 = vld [vmem:[#allocation6 + $0x1c8] sm:$0xff]
    %v134 = vld [vmem:[#allocation6 + $0x1d0] sm:$0xff]
    %v135 = vld [vmem:[#allocation6 + $0x1d8] sm:$0xff]
    %v136 = vld [vmem:[#allocation6 + $0x1e0] sm:$0xff]
    %v137 = vld [vmem:[#allocation6 + $0x1e8] sm:$0xff]
    %v138 = vld [vmem:[#allocation6 + $0x1f0] sm:$0xff]
    %v139 = vld [vmem:[#allocation6 + $0x1f8] sm:$0xff]
    %140 = vmatprep.subr.mxu0 %v137
    %141 = vmatpush1.msra.mxu0 %v136
    %142 = vmatprep.subr.mxu0 %v133
    %143 = vmatpush1.msra.mxu0 %v132
    %144 = vmatprep.subr.mxu0 %v129
    %145 = vmatpush1.msra.mxu0 %v128
    %146 = vmatprep.subr.mxu0 %v125
    %147 = vmatpush1.msra.mxu0 %v124
    %148 = vmatprep.subr.mxu0 %v121
    %149 = vmatpush1.msra.mxu0 %v120
    %150 = vmatprep.subr.mxu0 %v117
    %151 = vmatpush1.msra.mxu0 %v116
    %152 = vmatprep.subr.mxu0 %v113
    %153 = vmatpush1.msra.mxu0 %v112
    %154 = vmatprep.subr.mxu0 %v109
    %155 = vmatpush1.msra.mxu0 %v108
    %156 = vmatprep.subr.mxu0 %v105
    %157 = vmatpush1.msra.mxu0 %v104
    %158 = vmatprep.subr.mxu0 %v101
    %159 = vmatpush1.msra.mxu0 %v100
    %160 = vmatprep.subr.mxu0 %v97
    %161 = vmatpush1.msra.mxu0 %v96
    %162 = vmatprep.subr.mxu0 %v93
    %163 = vmatpush1.msra.mxu0 %v92
    %164 = vmatprep.subr.mxu0 %v89
    %165 = vmatpush1.msra.mxu0 %v88
    %166 = vmatprep.subr.mxu0 %v85
    %167 = vmatpush1.msra.mxu0 %v84
    %168 = vmatprep.subr.mxu0 %v81
    %169 = vmatpush1.msra.mxu0 %v80
    %170 = vmatprep.subr.mxu0 %v77
    %171 = vmatpush1.msra.mxu0 %v76
    %172 = vmatprep.subr.mxu0 0.0
    %173 = vmatpush2.msra.mxu0 0.0
    %174 = vmatprep.subr.mxu0 0.0
    %175 = vmatpush2.msra.mxu0 0.0
    %176 = vmatprep.subr.mxu0 0.0
    %177 = vmatpush2.msra.mxu0 0.0
    %178 = vmatprep.subr.mxu0 0.0
    %179 = vmatpush2.msra.mxu0 0.0
    %180 = vmatprep.subr.mxu0 0.0
    %181 = vmatpush2.msra.mxu0 0.0
    %182 = vmatprep.subr.mxu0 0.0
    %183 = vmatpush2.msra.mxu0 0.0
    %184 = vmatprep.subr.mxu0 0.0
    %185 = vmatpush2.msra.mxu0 0.0
    %186 = vmatprep.subr.mxu0 0.0
    %187 = vmatpush2.msra.mxu0 0.0
    %188 = vmatprep.subr.mxu0 0.0
    %189 = vmatpush2.msra.mxu0 0.0
    %190 = vmatprep.subr.mxu0 0.0
    %191 = vmatpush2.msra.mxu0 0.0
    %192 = vmatprep.subr.mxu0 0.0
    %193 = vmatpush2.msra.mxu0 0.0
    %194 = vmatprep.subr.mxu0 0.0
    %195 = vmatpush2.msra.mxu0 0.0
    %196 = vmatprep.subr.mxu0 0.0
    %197 = vmatpush2.msra.mxu0 0.0
    %198 = vmatprep.subr.mxu0 0.0
    %199 = vmatpush2.msra.mxu0 0.0
    %200 = vmatprep.subr.mxu0 0.0
    %201 = vmatpush2.msra.mxu0 0.0
    %202 = vmatprep.subr.mxu0 0.0
    %203 = vmatpush2.msra.mxu0 0.0
    %204 = vmatprep.mubr.f32.mxu0 0.0
    %205 = vmatmul.mubr.f32.gmra.mxu0 %v74
    %v206 = vpop.f32.mrf.mxu0
    %v207 = vadd.f32 0.0, %v206
    %v208 = vpop.f32.mrf.mxu0
    %v209 = vadd.f32 0.0, %v208
    %210 = vmatprep.mubr.f32.mxu0 0.0
    %211 = vmatmul.mubr.f32.gmra.mxu0 %v75
    %v212 = vpop.f32.mrf.mxu0
    %v213 = vadd.f32 0.0, %v212
    %v214 = vpop.f32.mrf.mxu0
    %v215 = vadd.f32 0.0, %v214
    %216 = vdwg.mxu0
    %217 = vmatprep.subr.mxu0 %v139
    %218 = vmatpush1.msra.mxu0 %v138
    %219 = vmatprep.subr.mxu0 %v135
    %220 = vmatpush1.msra.mxu0 %v134
    %221 = vmatprep.subr.mxu0 %v131
    %222 = vmatpush1.msra.mxu0 %v130
    %223 = vmatprep.subr.mxu0 %v127
    %224 = vmatpush1.msra.mxu0 %v126
    %225 = vmatprep.subr.mxu0 %v123
    %226 = vmatpush1.msra.mxu0 %v122
    %227 = vmatprep.subr.mxu0 %v119
    %228 = vmatpush1.msra.mxu0 %v118
    %229 = vmatprep.subr.mxu0 %v115
    %230 = vmatpush1.msra.mxu0 %v114
    %231 = vmatprep.subr.mxu0 %v111
    %232 = vmatpush1.msra.mxu0 %v110
    %233 = vmatprep.subr.mxu0 %v107
    %234 = vmatpush1.msra.mxu0 %v106
    %235 = vmatprep.subr.mxu0 %v103
    %236 = vmatpush1.msra.mxu0 %v102
    %237 = vmatprep.subr.mxu0 %v99
    %238 = vmatpush1.msra.mxu0 %v98
    %239 = vmatprep.subr.mxu0 %v95
    %240 = vmatpush1.msra.mxu0 %v94
    %241 = vmatprep.subr.mxu0 %v91
    %242 = vmatpush1.msra.mxu0 %v90
    %243 = vmatprep.subr.mxu0 %v87
    %244 = vmatpush1.msra.mxu0 %v86
    %245 = vmatprep.subr.mxu0 %v83
    %246 = vmatpush1.msra.mxu0 %v82
    %247 = vmatprep.subr.mxu0 %v79
    %248 = vmatpush1.msra.mxu0 %v78
    %249 = vmatprep.subr.mxu0 0.0
    %250 = vmatpush2.msra.mxu0 0.0
    %251 = vmatprep.subr.mxu0 0.0
    %252 = vmatpush2.msra.mxu0 0.0
    %253 = vmatprep.subr.mxu0 0.0
    %254 = vmatpush2.msra.mxu0 0.0
    %255 = vmatprep.subr.mxu0 0.0
    %256 = vmatpush2.msra.mxu0 0.0
    %257 = vmatprep.subr.mxu0 0.0
    %258 = vmatpush2.msra.mxu0 0.0
    %259 = vmatprep.subr.mxu0 0.0
    %260 = vmatpush2.msra.mxu0 0.0
    %261 = vmatprep.subr.mxu0 0.0
    %262 = vmatpush2.msra.mxu0 0.0
    %263 = vmatprep.subr.mxu0 0.0
    %264 = vmatpush2.msra.mxu0 0.0
    %265 = vmatprep.subr.mxu0 0.0
    %266 = vmatpush2.msra.mxu0 0.0
    %267 = vmatprep.subr.mxu0 0.0
    %268 = vmatpush2.msra.mxu0 0.0
    %269 = vmatprep.subr.mxu0 0.0
    %270 = vmatpush2.msra.mxu0 0.0
    %271 = vmatprep.subr.mxu0 0.0
    %272 = vmatpush2.msra.mxu0 0.0
    %273 = vmatprep.subr.mxu0 0.0
    %274 = vmatpush2.msra.mxu0 0.0
    %275 = vmatprep.subr.mxu0 0.0
    %276 = vmatpush2.msra.mxu0 0.0
    %277 = vmatprep.subr.mxu0 0.0
    %278 = vmatpush2.msra.mxu0 0.0
    %279 = vmatprep.subr.mxu0 0.0
    %280 = vmatpush2.msra.mxu0 0.0
    %281 = vmatprep.mubr.f32.mxu0 0.0
    %282 = vmatmul.mubr.f32.gmra.mxu0 %v74
    %v283 = vpop.f32.mrf.mxu0
    %v284 = vadd.f32 0.0, %v283
    %v285 = vpop.f32.mrf.mxu0
    %v286 = vadd.f32 0.0, %v285
    %287 = vmatprep.mubr.f32.mxu0 0.0
    %288 = vmatmul.mubr.f32.gmra.mxu0 %v75
    %v289 = vpop.f32.mrf.mxu0
    %v290 = vadd.f32 0.0, %v289
    %v291 = vpop.f32.mrf.mxu0
    %v292 = vadd.f32 0.0, %v291
    %293 = vdwg.mxu0
    %v294 = vadd.f32 %v66, %v207
    %v295 = vadd.f32 %v67, %v209
    %v296 = vadd.f32 %v68, %v284
    %v297 = vadd.f32 %v69, %v286
    %v298 = vadd.f32 %v70, %v213
    %v299 = vadd.f32 %v71, %v215
    %v300 = vadd.f32 %v72, %v290
    %v301 = vadd.f32 %v73, %v292
    %302 = vst [vmem:[#allocation2] sm:$0xff] %v294
    %303 = vst [vmem:[#allocation2 + $0x8] sm:$0xff] %v295
    %304 = vst [vmem:[#allocation2 + $0x10] sm:$0xff] %v296
    %305 = vst [vmem:[#allocation2 + $0x18] sm:$0xff] %v297
    %306 = vst [vmem:[#allocation2 + $0x20] sm:$0xff] %v298
    %307 = vst [vmem:[#allocation2 + $0x28] sm:$0xff] %v299
    %308 = vst [vmem:[#allocation2 + $0x30] sm:$0xff] %v300
    %309 = vst [vmem:[#allocation2 + $0x38] sm:$0xff] %v301
    // Predicated region
    $region30: #{tpu_custom_call.1} parent=1 // pred_check
      %p310 = pneg %p54
    $region31: #{tpu_custom_call.1} parent=1 // pred_check_branch
      %312 = sbr.rel (%p310) target = $region33
    $region32: #{tpu_custom_call.1} parent=1 // pred_region
      %v313 = vld [vmem:[#allocation2] sm:$0xff]
      %v314 = vld [vmem:[#allocation2 + $0x8] sm:$0xff]
      %v315 = vld [vmem:[#allocation2 + $0x10] sm:$0xff]
      %v316 = vld [vmem:[#allocation2 + $0x18] sm:$0xff]
      %v317 = vld [vmem:[#allocation2 + $0x20] sm:$0xff]
      %v318 = vld [vmem:[#allocation2 + $0x28] sm:$0xff]
      %v319 = vld [vmem:[#allocation2 + $0x30] sm:$0xff]
      %v320 = vld [vmem:[#allocation2 + $0x38] sm:$0xff]
      %v321 = vld [vmem:[#allocation8] sm:$0xf]
      %v323 = vlaneseq
      %v324 = vshrl.u32 %v323, 7
      %v325 = vsub.s32 0, %v324
      %v326 = vrot.slane %v321, %v325
      %v327 = vlaneseq
      %v328 = vshrl.u32 %v327, 7
      %v329 = vsub.s32 1, %v328
      %v330 = vrot.slane %v321, %v329
      %v331 = vlaneseq
      %v332 = vshrl.u32 %v331, 7
      %v333 = vsub.s32 2, %v332
      %v334 = vrot.slane %v321, %v333
      %v335 = vlaneseq
      %v336 = vshrl.u32 %v335, 7
      %v337 = vsub.s32 3, %v336
      %v338 = vrot.slane %v321, %v337
      %v343 = vadd.f32 %v313, %v326
      %v344 = vadd.f32 %v314, %v330
      %v345 = vadd.f32 %v315, %v334
      %v346 = vadd.f32 %v316, %v338
      %v347 = vadd.f32 %v317, %v326
      %v348 = vadd.f32 %v318, %v330
      %v349 = vadd.f32 %v319, %v334
      %v350 = vadd.f32 %v320, %v338
      %351 = vst [vmem:[#allocation9] sm:$0xff] %v343
      %352 = vst [vmem:[#allocation9 + $0x8] sm:$0xff] %v344
      %353 = vst [vmem:[#allocation9 + $0x10] sm:$0xff] %v345
      %354 = vst [vmem:[#allocation9 + $0x18] sm:$0xff] %v346
      %355 = vst [vmem:[#allocation9 + $0x20] sm:$0xff] %v347
      %356 = vst [vmem:[#allocation9 + $0x28] sm:$0xff] %v348
      %357 = vst [vmem:[#allocation9 + $0x30] sm:$0xff] %v349
      %358 = vst [vmem:[#allocation9 + $0x38] sm:$0xff] %v350
    $region33: #{tpu_custom_call.1} parent=1 // pred_fallthru
      _
    // Predicated region
    $region34: #{tpu_custom_call.1} parent=1 // pred_check
      _
    $region35: #{tpu_custom_call.1} parent=1 // pred_check_branch
      %360 = sbr.rel (0) target = $region37
    $region36: #{tpu_custom_call.1} parent=1 // pred_region
      %s362 = ssub.s32 1024, 1024
      %363 = vsyncadd [#allocation5], %s362
      %s364 = sshll.u32 [#allocation9], 4
      %s365 = int_to_ptr.vmem [resolvable:$true] %s364
      %370 = dma.vmem_to_hbm [thread:$0]  %s365, 1024, %s3, [#allocation5], 512, 512, 32
    $region37: #{tpu_custom_call.1} parent=1 // pred_fallthru
      _
    // Predicated region
    $region38: #{tpu_custom_call.1} parent=1 // pred_check
      _
    $region39: #{tpu_custom_call.1} parent=1 // pred_check_branch
      %372 = sbr.rel (0) target = $region41
    $region40: #{tpu_custom_call.1} parent=1 // pred_region
      %373 = dma.done [#allocation5], 1024
    $region41: #{tpu_custom_call.1} parent=1 // pred_fallthru
      _
    %374 = vsyncpa [#allocation4], 1
    %375 = vsyncpa [#allocation7], 1
    %376 = vsyncpa [#allocation5], 1

</llo_original>
